<compile_context>
chip_gen: v6e
topology: v6e:2x2x1
jax: 0.10.0
libtpu: 0.0.40
codegen_flags: <defaults>
</compile_context>

<pallas_src>
import jax
import jax.numpy as jnp
import numpy as np
from jax.experimental import pallas as pl
from jax.experimental.pallas import tpu as pltpu


def lstm_encoder_kernel(x_ref, wih_ref, whh_ref, b_ref, out_ref, cN_ref,
                        gx_ref):
    """Fused input projection + sequential LSTM recurrence.

    x_ref  : (B*T, D)      flattened batch-major inputs
    wih_ref: (D, 4H)       W_ih^T, gate columns permuted to [i, f, o, g]
    whh_ref: (H, 4H)       W_hh^T, same permutation
    b_ref  : (1, 4H)       b_ih + b_hh, same permutation
    out_ref: (B, T*H)      hidden states for every step (lane-dense)
    cN_ref : (B, H)        final cell state
    gx_ref : (B, T, 4H)    VMEM scratch for input-side gate pre-activations
    """
    B, T, G = gx_ref.shape
    H = G // 4

    # Phase 1 (fused): one MXU matmul over all timesteps -> VMEM scratch.
    gates_x = (jnp.dot(x_ref[...], wih_ref[...],
                       preferred_element_type=jnp.float32) + b_ref[...])
    gx_ref[...] = gates_x.reshape(B, T, G)

    whh = whh_ref[...]
    h = jnp.zeros((B, H), jnp.float32)
    c = jnp.zeros((B, H), jnp.float32)
    hs = []

    # T is small & static -> full unroll gives the scheduler cross-step
    # visibility.  (For long T, stream T-chunks with emit_pipeline instead.)
    for t in range(T):
        gates = gx_ref[:, t, :] + jnp.dot(h, whh,
                                          preferred_element_type=jnp.float32)
        # Gate order [i, f, o, g]: sigmoid over 3H lanes, tanh over H lanes.
        sig = jax.nn.sigmoid(gates[:, :3 * H])
        g_g = jnp.tanh(gates[:, 3 * H:])
        i_g = sig[:, 0:H]
        f_g = sig[:, H:2 * H]
        o_g = sig[:, 2 * H:3 * H]
        c = f_g * c + i_g * g_g
        h = o_g * jnp.tanh(c)
        hs.append(h)

    # Single lane-dense writeback of all timesteps (no masked partial stores).
    out_ref[...] = jnp.concatenate(hs, axis=-1)
    cN_ref[...] = c


def encoder_forward(inputs, w_ih, w_hh, b_ih, b_hh):
    """Equivalent of Encoder.forward(inputs) with hidden0=None.

    inputs : (B, T, D) float32 (batch_first, like PyTorch)
    w_ih   : (4H, D), w_hh : (4H, H), b_ih/b_hh : (4H,)  (PyTorch [i,f,g,o])
    returns (output (B,T,H), state (1,B,H), cell (1,B,H))
    """
    B, T, D = inputs.shape
    H = w_hh.shape[1]

    # Permute PyTorch gate rows [i, f, g, o] -> [i, f, o, g] once, outside
    # the kernel, so the kernel can split transcendentals as sigmoid|tanh.
    perm = jnp.concatenate([
        jnp.arange(0, H), jnp.arange(H, 2 * H),
        jnp.arange(3 * H, 4 * H), jnp.arange(2 * H, 3 * H),
    ])
    wih_t = jnp.transpose(w_ih[perm])                 # (D, 4H)
    whh_t = jnp.transpose(w_hh[perm])                 # (H, 4H)
    bias = (b_ih + b_hh)[perm].reshape(1, 4 * H)      # (1, 4H)
    x_flat = inputs.reshape(B * T, D)                 # free reshape

    vmem = pl.BlockSpec(memory_space=pltpu.MemorySpace.VMEM)

    out_flat, c_n = pl.pallas_call(
        lstm_encoder_kernel,
        out_shape=(
            jax.ShapeDtypeStruct((B, T * H), jnp.float32),
            jax.ShapeDtypeStruct((B, H), jnp.float32),
        ),
        in_specs=[vmem, vmem, vmem, vmem],
        out_specs=(vmem, vmem),
        scratch_shapes=[pltpu.VMEM((B, T, 4 * H), jnp.float32)],
    )(x_flat, wih_t, whh_t, bias)

    out = out_flat.reshape(B, T, H)                   # free reshape
    state = out[:, T - 1, :][None]                    # h_n == last output
    cell = c_n[None]
    return out, state, cell


def lstm_reference(inputs, w_ih, w_hh, b_ih, b_hh):
    """Pure-JAX reference matching torch.nn.LSTM (batch_first, 1 layer)."""
    B, T, D = inputs.shape
    H = w_hh.shape[1]
    b = b_ih + b_hh

    def step(carry, x_t):
        h, c = carry
        gates = x_t @ w_ih.T + h @ w_hh.T + b
        i = jax.nn.sigmoid(gates[:, 0:H])
        f = jax.nn.sigmoid(gates[:, H:2 * H])
        g = jnp.tanh(gates[:, 2 * H:3 * H])
        o = jax.nn.sigmoid(gates[:, 3 * H:4 * H])
        c = f * c + i * g
        h = o * jnp.tanh(c)
        return (h, c), h

    h0 = jnp.zeros((B, H), jnp.float32)
    c0 = jnp.zeros((B, H), jnp.float32)
    (hN, cN), outs = jax.lax.scan(step, (h0, c0),
                                  jnp.transpose(inputs, (1, 0, 2)))
    return jnp.transpose(outs, (1, 0, 2)), hN[None], cN[None]


if __name__ == "__main__":
    # Shapes implied by the module: inputs (B, T, inputDim), hidden H.
    B, T, inputDim, hiddenDim = 2, 8, 4, 32

    key = jax.random.PRNGKey(0)
    k_x, k_wih, k_whh, k_bih, k_bhh = jax.random.split(key, 5)

    # Deterministic PyTorch-style init: U(-1/sqrt(H), 1/sqrt(H))
    bound = 1.0 / np.sqrt(hiddenDim)
    w_ih = jax.random.uniform(k_wih, (4 * hiddenDim, inputDim),
                              jnp.float32, -bound, bound)
    w_hh = jax.random.uniform(k_whh, (4 * hiddenDim, hiddenDim),
                              jnp.float32, -bound, bound)
    b_ih = jax.random.uniform(k_bih, (4 * hiddenDim,),
                              jnp.float32, -bound, bound)
    b_hh = jax.random.uniform(k_bhh, (4 * hiddenDim,),
                              jnp.float32, -bound, bound)

    x = jax.random.normal(k_x, (B, T, inputDim), jnp.float32)

    output, state, cell = encoder_forward(x, w_ih, w_hh, b_ih, b_hh)
    jax.block_until_ready((output, state, cell))

    # Correctness check against pure-JAX LSTM reference.
    ref_out, ref_state, ref_cell = lstm_reference(x, w_ih, w_hh, b_ih, b_hh)
    np.testing.assert_allclose(np.asarray(output), np.asarray(ref_out),
                               rtol=1e-5, atol=1e-5)
    np.testing.assert_allclose(np.asarray(state), np.asarray(ref_state),
                               rtol=1e-5, atol=1e-5)
    np.testing.assert_allclose(np.asarray(cell), np.asarray(ref_cell),
                               rtol=1e-5, atol=1e-5)

    assert output.shape == (B, T, hiddenDim)
    assert state.shape == (1, B, hiddenDim)
    assert cell.shape == (1, B, hiddenDim)
    print("KERNEL_OK")
</pallas_src>

<mosaic_0001>
module attributes {stable_mosaic.version = 11 : i64} {
  func.func @lstm_encoder_kernel(%arg0: memref<16x4xf32, #tpu.memory_space<vmem>>, %arg1: memref<4x128xf32, #tpu.memory_space<vmem>>, %arg2: memref<32x128xf32, #tpu.memory_space<vmem>>, %arg3: memref<1x128xf32, #tpu.memory_space<vmem>>, %arg4: memref<2x256xf32, #tpu.memory_space<vmem>>, %arg5: memref<2x32xf32, #tpu.memory_space<vmem>>, %arg6: memref<2x8x128xf32, #tpu.memory_space<vmem>>) attributes {dimension_semantics = [], scalar_prefetch = 0 : i64, scratch_operands = 1 : i64, tpu.core_type = #tpu.core_type<tc>} {
    %c0 = arith.constant 0 : index
    %c0_0 = arith.constant 0 : index
    %0 = vector.load %arg0[%c0, %c0_0] : memref<16x4xf32, #tpu.memory_space<vmem>>, vector<16x4xf32>
    %c0_1 = arith.constant 0 : index
    %c0_2 = arith.constant 0 : index
    %1 = vector.load %arg1[%c0_1, %c0_2] : memref<4x128xf32, #tpu.memory_space<vmem>>, vector<4x128xf32>
    %cst = arith.constant dense<0.000000e+00> : vector<16x128xf32>
    %2 = tpu.matmul %0, %1, %cst {dimension_numbers = #tpu.dot_dimension_numbers<[1], [0], [0], [1], [0, 0, 1, 1], [], []>} : vector<16x4xf32>, vector<4x128xf32>, vector<16x128xf32> -> vector<16x128xf32>
    %c0_3 = arith.constant 0 : index
    %c0_4 = arith.constant 0 : index
    %3 = vector.load %arg3[%c0_3, %c0_4] : memref<1x128xf32, #tpu.memory_space<vmem>>, vector<1x128xf32>
    %4 = vector.broadcast %3 : vector<1x128xf32> to vector<16x128xf32>
    %5 = arith.addf %2, %4 : vector<16x128xf32>
    %6 = vector.shape_cast %5 : vector<16x128xf32> to vector<2x8x128xf32>
    %c0_5 = arith.constant 0 : index
    %c0_6 = arith.constant 0 : index
    %c0_7 = arith.constant 0 : index
    %7 = vector.load %arg6[%c0_5, %c0_6, %c0_7] : memref<2x8x128xf32, #tpu.memory_space<vmem>>, vector<2x8x128xf32>
    tpu.vector_store %arg6[%c0_5, %c0_6, %c0_7], %6 {strides = array<i32>} : memref<2x8x128xf32, #tpu.memory_space<vmem>>, vector<2x8x128xf32>,
    %c0_8 = arith.constant 0 : index
    %c0_9 = arith.constant 0 : index
    %8 = vector.load %arg2[%c0_8, %c0_9] : memref<32x128xf32, #tpu.memory_space<vmem>>, vector<32x128xf32>
    %cst_10 = arith.constant 0.000000e+00 : f32
    %9 = vector.broadcast %cst_10 : f32 to vector<2x32xf32>
    %cst_11 = arith.constant 0.000000e+00 : f32
    %10 = vector.broadcast %cst_11 : f32 to vector<2x32xf32>
    %c0_12 = arith.constant 0 : index
    %c0_13 = arith.constant 0 : index
    %c0_14 = arith.constant 0 : index
    %11 = vector.load %arg6[%c0_12, %c0_13, %c0_14] : memref<2x8x128xf32, #tpu.memory_space<vmem>>, vector<2x1x128xf32>
    %12 = vector.shape_cast %11 : vector<2x1x128xf32> to vector<2x128xf32>
    %cst_15 = arith.constant dense<0.000000e+00> : vector<2x128xf32>
    %13 = tpu.matmul %9, %8, %cst_15 {dimension_numbers = #tpu.dot_dimension_numbers<[1], [0], [0], [1], [0, 0, 1, 1], [], []>} : vector<2x32xf32>, vector<32x128xf32>, vector<2x128xf32> -> vector<2x128xf32>
    %14 = arith.addf %12, %13 : vector<2x128xf32>
    %15 = vector.extract_strided_slice %14 {offsets = [0, 0], sizes = [2, 96], strides = [1, 1]} : vector<2x128xf32> to vector<2x96xf32>
    %16 = arith.negf %15 : vector<2x96xf32>
    %17 = math.exp %16 : vector<2x96xf32>
    %cst_16 = arith.constant 1.000000e+00 : f32
    %18 = vector.broadcast %cst_16 : f32 to vector<2x96xf32>
    %19 = arith.addf %18, %17 : vector<2x96xf32>
    %20 = arith.divf %18, %19 : vector<2x96xf32>
    %21 = vector.extract_strided_slice %14 {offsets = [0, 96], sizes = [2, 32], strides = [1, 1]} : vector<2x128xf32> to vector<2x32xf32>
    %22 = math.tanh %21 : vector<2x32xf32>
    %23 = vector.extract_strided_slice %20 {offsets = [0, 0], sizes = [2, 32], strides = [1, 1]} : vector<2x96xf32> to vector<2x32xf32>
    %24 = vector.extract_strided_slice %20 {offsets = [0, 32], sizes = [2, 32], strides = [1, 1]} : vector<2x96xf32> to vector<2x32xf32>
    %25 = vector.extract_strided_slice %20 {offsets = [0, 64], sizes = [2, 32], strides = [1, 1]} : vector<2x96xf32> to vector<2x32xf32>
    %26 = arith.mulf %24, %10 : vector<2x32xf32>
    %27 = arith.mulf %23, %22 : vector<2x32xf32>
    %28 = arith.addf %26, %27 : vector<2x32xf32>
    %29 = math.tanh %28 : vector<2x32xf32>
    %30 = arith.mulf %25, %29 : vector<2x32xf32>
    %c0_17 = arith.constant 0 : index
    %c1 = arith.constant 1 : index
    %c0_18 = arith.constant 0 : index
    %31 = vector.load %arg6[%c0_17, %c1, %c0_18] : memref<2x8x128xf32, #tpu.memory_space<vmem>>, vector<2x1x128xf32>
    %32 = vector.shape_cast %31 : vector<2x1x128xf32> to vector<2x128xf32>
    %cst_19 = arith.constant dense<0.000000e+00> : vector<2x128xf32>
    %33 = tpu.matmul %30, %8, %cst_19 {dimension_numbers = #tpu.dot_dimension_numbers<[1], [0], [0], [1], [0, 0, 1, 1], [], []>} : vector<2x32xf32>, vector<32x128xf32>, vector<2x128xf32> -> vector<2x128xf32>
    %34 = arith.addf %32, %33 : vector<2x128xf32>
    %35 = vector.extract_strided_slice %34 {offsets = [0, 0], sizes = [2, 96], strides = [1, 1]} : vector<2x128xf32> to vector<2x96xf32>
    %36 = arith.negf %35 : vector<2x96xf32>
    %37 = math.exp %36 : vector<2x96xf32>
    %cst_20 = arith.constant 1.000000e+00 : f32
    %38 = vector.broadcast %cst_20 : f32 to vector<2x96xf32>
    %39 = arith.addf %38, %37 : vector<2x96xf32>
    %40 = arith.divf %38, %39 : vector<2x96xf32>
    %41 = vector.extract_strided_slice %34 {offsets = [0, 96], sizes = [2, 32], strides = [1, 1]} : vector<2x128xf32> to vector<2x32xf32>
    %42 = math.tanh %41 : vector<2x32xf32>
    %43 = vector.extract_strided_slice %40 {offsets = [0, 0], sizes = [2, 32], strides = [1, 1]} : vector<2x96xf32> to vector<2x32xf32>
    %44 = vector.extract_strided_slice %40 {offsets = [0, 32], sizes = [2, 32], strides = [1, 1]} : vector<2x96xf32> to vector<2x32xf32>
    %45 = vector.extract_strided_slice %40 {offsets = [0, 64], sizes = [2, 32], strides = [1, 1]} : vector<2x96xf32> to vector<2x32xf32>
    %46 = arith.mulf %44, %28 : vector<2x32xf32>
    %47 = arith.mulf %43, %42 : vector<2x32xf32>
    %48 = arith.addf %46, %47 : vector<2x32xf32>
    %49 = math.tanh %48 : vector<2x32xf32>
    %50 = arith.mulf %45, %49 : vector<2x32xf32>
    %c0_21 = arith.constant 0 : index
    %c2 = arith.constant 2 : index
    %c0_22 = arith.constant 0 : index
    %51 = vector.load %arg6[%c0_21, %c2, %c0_22] : memref<2x8x128xf32, #tpu.memory_space<vmem>>, vector<2x1x128xf32>
    %52 = vector.shape_cast %51 : vector<2x1x128xf32> to vector<2x128xf32>
    %cst_23 = arith.constant dense<0.000000e+00> : vector<2x128xf32>
    %53 = tpu.matmul %50, %8, %cst_23 {dimension_numbers = #tpu.dot_dimension_numbers<[1], [0], [0], [1], [0, 0, 1, 1], [], []>} : vector<2x32xf32>, vector<32x128xf32>, vector<2x128xf32> -> vector<2x128xf32>
    %54 = arith.addf %52, %53 : vector<2x128xf32>
    %55 = vector.extract_strided_slice %54 {offsets = [0, 0], sizes = [2, 96], strides = [1, 1]} : vector<2x128xf32> to vector<2x96xf32>
    %56 = arith.negf %55 : vector<2x96xf32>
    %57 = math.exp %56 : vector<2x96xf32>
    %cst_24 = arith.constant 1.000000e+00 : f32
    %58 = vector.broadcast %cst_24 : f32 to vector<2x96xf32>
    %59 = arith.addf %58, %57 : vector<2x96xf32>
    %60 = arith.divf %58, %59 : vector<2x96xf32>
    %61 = vector.extract_strided_slice %54 {offsets = [0, 96], sizes = [2, 32], strides = [1, 1]} : vector<2x128xf32> to vector<2x32xf32>
    %62 = math.tanh %61 : vector<2x32xf32>
    %63 = vector.extract_strided_slice %60 {offsets = [0, 0], sizes = [2, 32], strides = [1, 1]} : vector<2x96xf32> to vector<2x32xf32>
    %64 = vector.extract_strided_slice %60 {offsets = [0, 32], sizes = [2, 32], strides = [1, 1]} : vector<2x96xf32> to vector<2x32xf32>
    %65 = vector.extract_strided_slice %60 {offsets = [0, 64], sizes = [2, 32], strides = [1, 1]} : vector<2x96xf32> to vector<2x32xf32>
    %66 = arith.mulf %64, %48 : vector<2x32xf32>
    %67 = arith.mulf %63, %62 : vector<2x32xf32>
    %68 = arith.addf %66, %67 : vector<2x32xf32>
    %69 = math.tanh %68 : vector<2x32xf32>
    %70 = arith.mulf %65, %69 : vector<2x32xf32>
    %c0_25 = arith.constant 0 : index
    %c3 = arith.constant 3 : index
    %c0_26 = arith.constant 0 : index
    %71 = vector.load %arg6[%c0_25, %c3, %c0_26] : memref<2x8x128xf32, #tpu.memory_space<vmem>>, vector<2x1x128xf32>
    %72 = vector.shape_cast %71 : vector<2x1x128xf32> to vector<2x128xf32>
    %cst_27 = arith.constant dense<0.000000e+00> : vector<2x128xf32>
    %73 = tpu.matmul %70, %8, %cst_27 {dimension_numbers = #tpu.dot_dimension_numbers<[1], [0], [0], [1], [0, 0, 1, 1], [], []>} : vector<2x32xf32>, vector<32x128xf32>, vector<2x128xf32> -> vector<2x128xf32>
    %74 = arith.addf %72, %73 : vector<2x128xf32>
    %75 = vector.extract_strided_slice %74 {offsets = [0, 0], sizes = [2, 96], strides = [1, 1]} : vector<2x128xf32> to vector<2x96xf32>
    %76 = arith.negf %75 : vector<2x96xf32>
    %77 = math.exp %76 : vector<2x96xf32>
    %cst_28 = arith.constant 1.000000e+00 : f32
    %78 = vector.broadcast %cst_28 : f32 to vector<2x96xf32>
    %79 = arith.addf %78, %77 : vector<2x96xf32>
    %80 = arith.divf %78, %79 : vector<2x96xf32>
    %81 = vector.extract_strided_slice %74 {offsets = [0, 96], sizes = [2, 32], strides = [1, 1]} : vector<2x128xf32> to vector<2x32xf32>
    %82 = math.tanh %81 : vector<2x32xf32>
    %83 = vector.extract_strided_slice %80 {offsets = [0, 0], sizes = [2, 32], strides = [1, 1]} : vector<2x96xf32> to vector<2x32xf32>
    %84 = vector.extract_strided_slice %80 {offsets = [0, 32], sizes = [2, 32], strides = [1, 1]} : vector<2x96xf32> to vector<2x32xf32>
    %85 = vector.extract_strided_slice %80 {offsets = [0, 64], sizes = [2, 32], strides = [1, 1]} : vector<2x96xf32> to vector<2x32xf32>
    %86 = arith.mulf %84, %68 : vector<2x32xf32>
    %87 = arith.mulf %83, %82 : vector<2x32xf32>
    %88 = arith.addf %86, %87 : vector<2x32xf32>
    %89 = math.tanh %88 : vector<2x32xf32>
    %90 = arith.mulf %85, %89 : vector<2x32xf32>
    %c0_29 = arith.constant 0 : index
    %c4 = arith.constant 4 : index
    %c0_30 = arith.constant 0 : index
    %91 = vector.load %arg6[%c0_29, %c4, %c0_30] : memref<2x8x128xf32, #tpu.memory_space<vmem>>, vector<2x1x128xf32>
    %92 = vector.shape_cast %91 : vector<2x1x128xf32> to vector<2x128xf32>
    %cst_31 = arith.constant dense<0.000000e+00> : vector<2x128xf32>
    %93 = tpu.matmul %90, %8, %cst_31 {dimension_numbers = #tpu.dot_dimension_numbers<[1], [0], [0], [1], [0, 0, 1, 1], [], []>} : vector<2x32xf32>, vector<32x128xf32>, vector<2x128xf32> -> vector<2x128xf32>
    %94 = arith.addf %92, %93 : vector<2x128xf32>
    %95 = vector.extract_strided_slice %94 {offsets = [0, 0], sizes = [2, 96], strides = [1, 1]} : vector<2x128xf32> to vector<2x96xf32>
    %96 = arith.negf %95 : vector<2x96xf32>
    %97 = math.exp %96 : vector<2x96xf32>
    %cst_32 = arith.constant 1.000000e+00 : f32
    %98 = vector.broadcast %cst_32 : f32 to vector<2x96xf32>
    %99 = arith.addf %98, %97 : vector<2x96xf32>
    %100 = arith.divf %98, %99 : vector<2x96xf32>
    %101 = vector.extract_strided_slice %94 {offsets = [0, 96], sizes = [2, 32], strides = [1, 1]} : vector<2x128xf32> to vector<2x32xf32>
    %102 = math.tanh %101 : vector<2x32xf32>
    %103 = vector.extract_strided_slice %100 {offsets = [0, 0], sizes = [2, 32], strides = [1, 1]} : vector<2x96xf32> to vector<2x32xf32>
    %104 = vector.extract_strided_slice %100 {offsets = [0, 32], sizes = [2, 32], strides = [1, 1]} : vector<2x96xf32> to vector<2x32xf32>
    %105 = vector.extract_strided_slice %100 {offsets = [0, 64], sizes = [2, 32], strides = [1, 1]} : vector<2x96xf32> to vector<2x32xf32>
    %106 = arith.mulf %104, %88 : vector<2x32xf32>
    %107 = arith.mulf %103, %102 : vector<2x32xf32>
    %108 = arith.addf %106, %107 : vector<2x32xf32>
    %109 = math.tanh %108 : vector<2x32xf32>
    %110 = arith.mulf %105, %109 : vector<2x32xf32>
    %c0_33 = arith.constant 0 : index
    %c5 = arith.constant 5 : index
    %c0_34 = arith.constant 0 : index
    %111 = vector.load %arg6[%c0_33, %c5, %c0_34] : memref<2x8x128xf32, #tpu.memory_space<vmem>>, vector<2x1x128xf32>
    %112 = vector.shape_cast %111 : vector<2x1x128xf32> to vector<2x128xf32>
    %cst_35 = arith.constant dense<0.000000e+00> : vector<2x128xf32>
    %113 = tpu.matmul %110, %8, %cst_35 {dimension_numbers = #tpu.dot_dimension_numbers<[1], [0], [0], [1], [0, 0, 1, 1], [], []>} : vector<2x32xf32>, vector<32x128xf32>, vector<2x128xf32> -> vector<2x128xf32>
    %114 = arith.addf %112, %113 : vector<2x128xf32>
    %115 = vector.extract_strided_slice %114 {offsets = [0, 0], sizes = [2, 96], strides = [1, 1]} : vector<2x128xf32> to vector<2x96xf32>
    %116 = arith.negf %115 : vector<2x96xf32>
    %117 = math.exp %116 : vector<2x96xf32>
    %cst_36 = arith.constant 1.000000e+00 : f32
    %118 = vector.broadcast %cst_36 : f32 to vector<2x96xf32>
    %119 = arith.addf %118, %117 : vector<2x96xf32>
    %120 = arith.divf %118, %119 : vector<2x96xf32>
    %121 = vector.extract_strided_slice %114 {offsets = [0, 96], sizes = [2, 32], strides = [1, 1]} : vector<2x128xf32> to vector<2x32xf32>
    %122 = math.tanh %121 : vector<2x32xf32>
    %123 = vector.extract_strided_slice %120 {offsets = [0, 0], sizes = [2, 32], strides = [1, 1]} : vector<2x96xf32> to vector<2x32xf32>
    %124 = vector.extract_strided_slice %120 {offsets = [0, 32], sizes = [2, 32], strides = [1, 1]} : vector<2x96xf32> to vector<2x32xf32>
    %125 = vector.extract_strided_slice %120 {offsets = [0, 64], sizes = [2, 32], strides = [1, 1]} : vector<2x96xf32> to vector<2x32xf32>
    %126 = arith.mulf %124, %108 : vector<2x32xf32>
    %127 = arith.mulf %123, %122 : vector<2x32xf32>
    %128 = arith.addf %126, %127 : vector<2x32xf32>
    %129 = math.tanh %128 : vector<2x32xf32>
    %130 = arith.mulf %125, %129 : vector<2x32xf32>
    %c0_37 = arith.constant 0 : index
    %c6 = arith.constant 6 : index
    %c0_38 = arith.constant 0 : index
    %131 = vector.load %arg6[%c0_37, %c6, %c0_38] : memref<2x8x128xf32, #tpu.memory_space<vmem>>, vector<2x1x128xf32>
    %132 = vector.shape_cast %131 : vector<2x1x128xf32> to vector<2x128xf32>
    %cst_39 = arith.constant dense<0.000000e+00> : vector<2x128xf32>
    %133 = tpu.matmul %130, %8, %cst_39 {dimension_numbers = #tpu.dot_dimension_numbers<[1], [0], [0], [1], [0, 0, 1, 1], [], []>} : vector<2x32xf32>, vector<32x128xf32>, vector<2x128xf32> -> vector<2x128xf32>
    %134 = arith.addf %132, %133 : vector<2x128xf32>
    %135 = vector.extract_strided_slice %134 {offsets = [0, 0], sizes = [2, 96], strides = [1, 1]} : vector<2x128xf32> to vector<2x96xf32>
    %136 = arith.negf %135 : vector<2x96xf32>
    %137 = math.exp %136 : vector<2x96xf32>
    %cst_40 = arith.constant 1.000000e+00 : f32
    %138 = vector.broadcast %cst_40 : f32 to vector<2x96xf32>
    %139 = arith.addf %138, %137 : vector<2x96xf32>
    %140 = arith.divf %138, %139 : vector<2x96xf32>
    %141 = vector.extract_strided_slice %134 {offsets = [0, 96], sizes = [2, 32], strides = [1, 1]} : vector<2x128xf32> to vector<2x32xf32>
    %142 = math.tanh %141 : vector<2x32xf32>
    %143 = vector.extract_strided_slice %140 {offsets = [0, 0], sizes = [2, 32], strides = [1, 1]} : vector<2x96xf32> to vector<2x32xf32>
    %144 = vector.extract_strided_slice %140 {offsets = [0, 32], sizes = [2, 32], strides = [1, 1]} : vector<2x96xf32> to vector<2x32xf32>
    %145 = vector.extract_strided_slice %140 {offsets = [0, 64], sizes = [2, 32], strides = [1, 1]} : vector<2x96xf32> to vector<2x32xf32>
    %146 = arith.mulf %144, %128 : vector<2x32xf32>
    %147 = arith.mulf %143, %142 : vector<2x32xf32>
    %148 = arith.addf %146, %147 : vector<2x32xf32>
    %149 = math.tanh %148 : vector<2x32xf32>
    %150 = arith.mulf %145, %149 : vector<2x32xf32>
    %c0_41 = arith.constant 0 : index
    %c7 = arith.constant 7 : index
    %c0_42 = arith.constant 0 : index
    %151 = vector.load %arg6[%c0_41, %c7, %c0_42] : memref<2x8x128xf32, #tpu.memory_space<vmem>>, vector<2x1x128xf32>
    %152 = vector.shape_cast %151 : vector<2x1x128xf32> to vector<2x128xf32>
    %cst_43 = arith.constant dense<0.000000e+00> : vector<2x128xf32>
    %153 = tpu.matmul %150, %8, %cst_43 {dimension_numbers = #tpu.dot_dimension_numbers<[1], [0], [0], [1], [0, 0, 1, 1], [], []>} : vector<2x32xf32>, vector<32x128xf32>, vector<2x128xf32> -> vector<2x128xf32>
    %154 = arith.addf %152, %153 : vector<2x128xf32>
    %155 = vector.extract_strided_slice %154 {offsets = [0, 0], sizes = [2, 96], strides = [1, 1]} : vector<2x128xf32> to vector<2x96xf32>
    %156 = arith.negf %155 : vector<2x96xf32>
    %157 = math.exp %156 : vector<2x96xf32>
    %cst_44 = arith.constant 1.000000e+00 : f32
    %158 = vector.broadcast %cst_44 : f32 to vector<2x96xf32>
    %159 = arith.addf %158, %157 : vector<2x96xf32>
    %160 = arith.divf %158, %159 : vector<2x96xf32>
    %161 = vector.extract_strided_slice %154 {offsets = [0, 96], sizes = [2, 32], strides = [1, 1]} : vector<2x128xf32> to vector<2x32xf32>
    %162 = math.tanh %161 : vector<2x32xf32>
    %163 = vector.extract_strided_slice %160 {offsets = [0, 0], sizes = [2, 32], strides = [1, 1]} : vector<2x96xf32> to vector<2x32xf32>
    %164 = vector.extract_strided_slice %160 {offsets = [0, 32], sizes = [2, 32], strides = [1, 1]} : vector<2x96xf32> to vector<2x32xf32>
    %165 = vector.extract_strided_slice %160 {offsets = [0, 64], sizes = [2, 32], strides = [1, 1]} : vector<2x96xf32> to vector<2x32xf32>
    %166 = arith.mulf %164, %148 : vector<2x32xf32>
    %167 = arith.mulf %163, %162 : vector<2x32xf32>
    %168 = arith.addf %166, %167 : vector<2x32xf32>
    %169 = math.tanh %168 : vector<2x32xf32>
    %170 = arith.mulf %165, %169 : vector<2x32xf32>
    %171 = tpu.concatenate %30, %50, %70, %90, %110, %130, %150, %170 in 1 : vector<2x32xf32>, vector<2x32xf32>, vector<2x32xf32>, vector<2x32xf32>, vector<2x32xf32>, vector<2x32xf32>, vector<2x32xf32>, vector<2x32xf32> -> vector<2x256xf32>
    %c0_45 = arith.constant 0 : index
    %c0_46 = arith.constant 0 : index
    %172 = vector.load %arg4[%c0_45, %c0_46] : memref<2x256xf32, #tpu.memory_space<vmem>>, vector<2x256xf32>
    tpu.vector_store %arg4[%c0_45, %c0_46], %171 {strides = array<i32>} : memref<2x256xf32, #tpu.memory_space<vmem>>, vector<2x256xf32>,
    %c0_47 = arith.constant 0 : index
    %c0_48 = arith.constant 0 : index
    %173 = vector.load %arg5[%c0_47, %c0_48] : memref<2x32xf32, #tpu.memory_space<vmem>>, vector<2x32xf32>
    tpu.vector_store %arg5[%c0_47, %c0_48], %168 {strides = array<i32>} : memref<2x32xf32, #tpu.memory_space<vmem>>, vector<2x32xf32>,
    return
  }
}

</mosaic_0001>

<llo_original>
// kernel: tpu_custom_call.1
$region0: #{tpu_custom_call.1}
  #allocation0 [shape = 'u32[]', space=smem, size = 0x4, offset = 0x4, fixed_abs, tag = 'smem constant byte address 0x4 - core index']
  #allocation1 [shape = 'u32[144,128]{1,0:T(1,128)}', space=vmem, size = 0x12000, scoped, tag = 'internal scratch']
  #allocation2 [shape = 'f32[2,8,128]{2,1,0:T(8,128)}', space=vmem, size = 0x2000, scoped, tag = 'scratch operand']
  %s0 = inlined_call_operand.vmem [shape: f32[16,4], index: 0, kind: input, shape index: {}]
  %s1 = inlined_call_operand.vmem [shape: f32[4,128], index: 1, kind: input, shape index: {}]
  %s2 = inlined_call_operand.hbm [shape: f32[32,128], index: 2, kind: input, shape index: {}]
  %s3 = inlined_call_operand.vmem [shape: f32[1,128], index: 3, kind: input, shape index: {}]
  %s4 = inlined_call_operand.hbm [shape: f32[2,256], index: 4, kind: output, shape index: {0}]
  %s5 = inlined_call_operand.hbm [shape: f32[2,32], index: 5, kind: output, shape index: {1}]
  %6 = xla_tuple %s4, %s5
  %s7 = sld [smem:[#allocation0]]
  $region38: #{tpu_custom_call.1} parent=0
    _
  %s9 = ssub.s32 1, %s7
  %s10 = scalar_select 0, %s9, %s7
  $region1: #{tpu_custom_call.1} parent=0
    #allocation3 [shape = 'u8[16384]{0}', space=vmem, size = 0x4000, scoped, tag = 'input window, operand 2, single buffered']
    #allocation4 [shape = 's32[1]{0}', space=sflag, size = 0x4, scoped, tag = 'scoped memory for tpu_custom_call.1']
    #allocation5 [shape = 's32[1]{0}', space=sflag, size = 0x4, scoped, tag = 'scoped memory for tpu_custom_call.1']
    #allocation6 [shape = 'u8[2048]{0}', space=vmem, size = 0x800, scoped, tag = 'output window, operand 0, single buffered']
    #allocation7 [shape = 'u8[1024]{0}', space=vmem, size = 0x400, scoped, tag = 'output window, operand 1, single buffered']
    #allocation8 [shape = 's32[1]{0}', space=sflag, size = 0x4, scoped, tag = 'scoped memory for tpu_custom_call.1']
    %11 = vsyncpa [#allocation4], 0
    %12 = vsyncpa [#allocation5], 0
    %13 = vsyncpa [#allocation8], 0
    // Predicated region
    $region2: #{tpu_custom_call.1} parent=1 // pred_check
      _
    $region3: #{tpu_custom_call.1} parent=1 // pred_check_branch
      %15 = sbr.rel (0) target = $region5
    $region4: #{tpu_custom_call.1} parent=1 // pred_region
      _
    $region5: #{tpu_custom_call.1} parent=1 // pred_fallthru
      _
    // Predicated region
    $region6: #{tpu_custom_call.1} parent=1 // pred_check
      _
    $region7: #{tpu_custom_call.1} parent=1 // pred_check_branch
      %17 = sbr.rel (0) target = $region9
    $region8: #{tpu_custom_call.1} parent=1 // pred_region
      _
    $region9: #{tpu_custom_call.1} parent=1 // pred_fallthru
      _
    // Predicated region
    $region10: #{tpu_custom_call.1} parent=1 // pred_check
      _
    $region11: #{tpu_custom_call.1} parent=1 // pred_check_branch
      %19 = sbr.rel (0) target = $region13
    $region12: #{tpu_custom_call.1} parent=1 // pred_region
      %s21 = ssub.s32 512, 512
      %22 = vsyncadd [#allocation4], %s21
      %s23 = sshll.u32 [#allocation3], 4
      %s24 = int_to_ptr.vmem [resolvable:$true] %s23
      %29 = dma.hbm_to_vmem [thread:$0]  %s2, 512, %s24, [#allocation4], 128, 128, 8
    $region13: #{tpu_custom_call.1} parent=1 // pred_fallthru
      _
    // Predicated region
    $region14: #{tpu_custom_call.1} parent=1 // pred_check
      _
    $region15: #{tpu_custom_call.1} parent=1 // pred_check_branch
      %31 = sbr.rel (0) target = $region17
    $region16: #{tpu_custom_call.1} parent=1 // pred_region
      _
    $region17: #{tpu_custom_call.1} parent=1 // pred_fallthru
      _
    // Predicated region
    $region18: #{tpu_custom_call.1} parent=1 // pred_check
      _
    $region19: #{tpu_custom_call.1} parent=1 // pred_check_branch
      %33 = sbr.rel (0) target = $region21
    $region20: #{tpu_custom_call.1} parent=1 // pred_region
      %34 = dma.done [#allocation4], 512
    $region21: #{tpu_custom_call.1} parent=1 // pred_fallthru
      _
    %v35 = vld [vmem:[%s0] sm:$0xff]
    %v36 = vld [vmem:[%s0 + $0x8] sm:$0xff]
    %v37 = vld [vmem:[%s1] sm:$0xf]
    %v38 = vld [vmem:[%s3] sm:$0x1]
    %v40 = vlaneseq
    %v41 = vshrl.u32 %v40, 7
    %v42 = vsub.s32 0, %v41
    %v43 = vrot.slane %v38, %v42
    %vm45 = vcmask 31744
    %v47 = vsel %vm45, %v35, 0
    %v50 = vsel %vm45, %v36, 0
    %vm52 = vcmask 1043456
    %v54 = vsel %vm52, %v37, 0
    %56 = vmatprep.subr.mxu0 0.0
    %57 = vmatpush1.msra.mxu0 0.0
    %58 = vmatprep.subr.mxu0 0.0
    %59 = vmatpush1.msra.mxu0 0.0
    %60 = vmatprep.subr.mxu0 0.0
    %61 = vmatpush1.msra.mxu0 0.0
    %62 = vmatprep.subr.mxu0 0.0
    %63 = vmatpush1.msra.mxu0 0.0
    %64 = vmatprep.subr.mxu0 0.0
    %65 = vmatpush1.msra.mxu0 0.0
    %66 = vmatprep.subr.mxu0 0.0
    %67 = vmatpush1.msra.mxu0 0.0
    %68 = vmatprep.subr.mxu0 0.0
    %69 = vmatpush1.msra.mxu0 0.0
    %70 = vmatprep.subr.mxu0 0.0
    %71 = vmatpush1.msra.mxu0 0.0
    %72 = vmatprep.subr.mxu0 0.0
    %73 = vmatpush1.msra.mxu0 0.0
    %74 = vmatprep.subr.mxu0 0.0
    %75 = vmatpush1.msra.mxu0 0.0
    %76 = vmatprep.subr.mxu0 0.0
    %77 = vmatpush1.msra.mxu0 0.0
    %78 = vmatprep.subr.mxu0 0.0
    %79 = vmatpush1.msra.mxu0 0.0
    %80 = vmatprep.subr.mxu0 0.0
    %81 = vmatpush1.msra.mxu0 0.0
    %82 = vmatprep.subr.mxu0 0.0
    %83 = vmatpush1.msra.mxu0 0.0
    %84 = vmatprep.subr.mxu0 0.0
    %85 = vmatpush1.msra.mxu0 0.0
    %86 = vmatprep.subr.mxu0 0.0
    %87 = vmatpush1.msra.mxu0 %v54
    %88 = vmatprep.subr.mxu0 0.0
    %89 = vmatpush2.msra.mxu0 0.0
    %90 = vmatprep.subr.mxu0 0.0
    %91 = vmatpush2.msra.mxu0 0.0
    %92 = vmatprep.subr.mxu0 0.0
    %93 = vmatpush2.msra.mxu0 0.0
    %94 = vmatprep.subr.mxu0 0.0
    %95 = vmatpush2.msra.mxu0 0.0
    %96 = vmatprep.subr.mxu0 0.0
    %97 = vmatpush2.msra.mxu0 0.0
    %98 = vmatprep.subr.mxu0 0.0
    %99 = vmatpush2.msra.mxu0 0.0
    %100 = vmatprep.subr.mxu0 0.0
    %101 = vmatpush2.msra.mxu0 0.0
    %102 = vmatprep.subr.mxu0 0.0
    %103 = vmatpush2.msra.mxu0 0.0
    %104 = vmatprep.subr.mxu0 0.0
    %105 = vmatpush2.msra.mxu0 0.0
    %106 = vmatprep.subr.mxu0 0.0
    %107 = vmatpush2.msra.mxu0 0.0
    %108 = vmatprep.subr.mxu0 0.0
    %109 = vmatpush2.msra.mxu0 0.0
    %110 = vmatprep.subr.mxu0 0.0
    %111 = vmatpush2.msra.mxu0 0.0
    %112 = vmatprep.subr.mxu0 0.0
    %113 = vmatpush2.msra.mxu0 0.0
    %114 = vmatprep.subr.mxu0 0.0
    %115 = vmatpush2.msra.mxu0 0.0
    %116 = vmatprep.subr.mxu0 0.0
    %117 = vmatpush2.msra.mxu0 0.0
    %118 = vmatprep.subr.mxu0 0.0
    %119 = vmatpush2.msra.mxu0 0.0
    %120 = vmatprep.mubr.f32.mxu0 0.0
    %121 = vmatmul.mubr.f32.gmra.mxu0 %v47
    %v122 = vpop.f32.mrf.mxu0
    %v123 = vadd.f32 %v43, %v122
    %v124 = vpop.f32.mrf.mxu0
    %125 = vmatprep.mubr.f32.mxu0 0.0
    %126 = vmatmul.mubr.f32.gmra.mxu0 %v50
    %v127 = vpop.f32.mrf.mxu0
    %v128 = vadd.f32 %v43, %v127
    %v129 = vpop.f32.mrf.mxu0
    %130 = vdwg.mxu0
    %131 = vst [vmem:[#allocation2] sm:$0xff] %v123
    %132 = vst [vmem:[#allocation2 + $0x8] sm:$0xff] %v128
    %v133 = vld [vmem:[#allocation3] sm:$0xff]
    %v134 = vld [vmem:[#allocation3 + $0x8] sm:$0xff]
    %v135 = vld [vmem:[#allocation3 + $0x10] sm:$0xff]
    %v136 = vld [vmem:[#allocation3 + $0x18] sm:$0xff]
    %v137 = vld [vmem:[#allocation2] sm:$0x1]
    %v138 = vld [vmem:[#allocation2 + $0x8] sm:$0x1]
    %vm139 = vcmask 261120
    %v141 = vsel %vm139, 0.0, 0
    %143 = vmatprep.subr.mxu0 0.0
    %144 = vmatpush1.msra.mxu0 0.0
    %145 = vmatprep.subr.mxu0 0.0
    %146 = vmatpush1.msra.mxu0 0.0
    %147 = vmatprep.subr.mxu0 0.0
    %148 = vmatpush1.msra.mxu0 0.0
    %149 = vmatprep.subr.mxu0 0.0
    %150 = vmatpush1.msra.mxu0 0.0
    %151 = vmatprep.subr.mxu0 0.0
    %152 = vmatpush1.msra.mxu0 0.0
    %153 = vmatprep.subr.mxu0 0.0
    %154 = vmatpush1.msra.mxu0 0.0
    %155 = vmatprep.subr.mxu0 0.0
    %156 = vmatpush1.msra.mxu0 0.0
    %157 = vmatprep.subr.mxu0 0.0
    %158 = vmatpush1.msra.mxu0 0.0
    %159 = vmatprep.subr.mxu0 0.0
    %160 = vmatpush1.msra.mxu0 0.0
    %161 = vmatprep.subr.mxu0 0.0
    %162 = vmatpush1.msra.mxu0 0.0
    %163 = vmatprep.subr.mxu0 0.0
    %164 = vmatpush1.msra.mxu0 0.0
    %165 = vmatprep.subr.mxu0 0.0
    %166 = vmatpush1.msra.mxu0 0.0
    %167 = vmatprep.subr.mxu0 0.0
    %168 = vmatpush1.msra.mxu0 %v136
    %169 = vmatprep.subr.mxu0 0.0
    %170 = vmatpush1.msra.mxu0 %v135
    %171 = vmatprep.subr.mxu0 0.0
    %172 = vmatpush1.msra.mxu0 %v134
    %173 = vmatprep.subr.mxu0 0.0
    %174 = vmatpush1.msra.mxu0 %v133
    %175 = vmatprep.subr.mxu0 0.0
    %176 = vmatpush2.msra.mxu0 0.0
    %177 = vmatprep.subr.mxu0 0.0
    %178 = vmatpush2.msra.mxu0 0.0
    %179 = vmatprep.subr.mxu0 0.0
    %180 = vmatpush2.msra.mxu0 0.0
    %181 = vmatprep.subr.mxu0 0.0
    %182 = vmatpush2.msra.mxu0 0.0
    %183 = vmatprep.subr.mxu0 0.0
    %184 = vmatpush2.msra.mxu0 0.0
    %185 = vmatprep.subr.mxu0 0.0
    %186 = vmatpush2.msra.mxu0 0.0
    %187 = vmatprep.subr.mxu0 0.0
    %188 = vmatpush2.msra.mxu0 0.0
    %189 = vmatprep.subr.mxu0 0.0
    %190 = vmatpush2.msra.mxu0 0.0
    %191 = vmatprep.subr.mxu0 0.0
    %192 = vmatpush2.msra.mxu0 0.0
    %193 = vmatprep.subr.mxu0 0.0
    %194 = vmatpush2.msra.mxu0 0.0
    %195 = vmatprep.subr.mxu0 0.0
    %196 = vmatpush2.msra.mxu0 0.0
    %197 = vmatprep.subr.mxu0 0.0
    %198 = vmatpush2.msra.mxu0 0.0
    %199 = vmatprep.subr.mxu0 0.0
    %200 = vmatpush2.msra.mxu0 0.0
    %201 = vmatprep.subr.mxu0 0.0
    %202 = vmatpush2.msra.mxu0 0.0
    %203 = vmatprep.subr.mxu0 0.0
    %204 = vmatpush2.msra.mxu0 0.0
    %205 = vmatprep.subr.mxu0 0.0
    %206 = vmatpush2.msra.mxu0 0.0
    %207 = vmatprep.mubr.f32.mxu0 0.0
    %208 = vmatmul.mubr.f32.gmra.mxu0 %v141
    %v209 = vpop.f32.mrf.mxu0
    %v210 = vadd.f32 0.0, %v209
    %v211 = vpop.f32.mrf.mxu0
    %212 = vdwg.mxu0
    %v214 = vrot.slane %v210, 1
    %v217 = vadd.f32 %v137, %v210
    %v218 = vadd.f32 %v138, %v214
    %v219 = vxor.u32 %v217, 2147483648
    %v220 = vxor.u32 %v218, 2147483648
    %v221 = vmul.f32 %v219, 1.442695
    %v222 = vpow.pop %v221
    %v223 = vmul.f32 %v220, 1.442695
    %v224 = vpow.pop %v223
    %v225 = vadd.f32 %v222, 1.0
    %v226 = vadd.f32 %v224, 1.0
    %v227 = vrcp.pop %v225
    %v228 = vmul.f32 1.0, %v227
    %v229 = vrcp.pop %v226
    %v230 = vmul.f32 1.0, %v229
    %v231 = vtanh.pop %v217
    %v232 = vtanh.pop %v218
    %v233 = vmul.f32 %v228, 0.0
    %v234 = vmul.f32 %v230, 0.0
    %237 = vrot.lane.b32.xlu0 %v231, 32
    %v238 = vpop.permute.xlu0 %237
    %239 = vrot.lane.b32.xlu0 %v232, 32
    %v240 = vpop.permute.xlu0 %239
    %v243 = vmul.f32 %v228, %v238
    %v244 = vmul.f32 %v230, %v240
    %247 = vrot.lane.b32.xlu0 %v243, 32
    %v248 = vpop.permute.xlu0 %247
    %249 = vrot.lane.b32.xlu0 %v244, 32
    %v250 = vpop.permute.xlu0 %249
    %v253 = vadd.f32 %v233, %v248
    %v254 = vadd.f32 %v234, %v250
    %v255 = vtanh.pop %v253
    %v256 = vtanh.pop %v254
    %259 = vrot.lane.b32.xlu0 %v255, 32
    %v260 = vpop.permute.xlu0 %259
    %261 = vrot.lane.b32.xlu0 %v256, 32
    %v262 = vpop.permute.xlu0 %261
    %v265 = vmul.f32 %v228, %v260
    %v266 = vmul.f32 %v230, %v262
    %v267 = vld [vmem:[#allocation2 + $0x1] sm:$0x1]
    %v268 = vld [vmem:[#allocation2 + $0x9] sm:$0x1]
    %v271 = vrot.slane %v266, 7
    %vm272 = vcmask 1041409
    %v273 = vsel %vm272, %v271, %v265
    %274 = vrot.lane.b32.xlu0 %v273, 64
    %v275 = vpop.permute.xlu0 %274
    %v276 = vsel %vm139, %v275, 0
    %278 = vmatprep.subr.mxu0 0.0
    %279 = vmatpush1.msra.mxu0 0.0
    %280 = vmatprep.subr.mxu0 0.0
    %281 = vmatpush1.msra.mxu0 0.0
    %282 = vmatprep.subr.mxu0 0.0
    %283 = vmatpush1.msra.mxu0 0.0
    %284 = vmatprep.subr.mxu0 0.0
    %285 = vmatpush1.msra.mxu0 0.0
    %286 = vmatprep.subr.mxu0 0.0
    %287 = vmatpush1.msra.mxu0 0.0
    %288 = vmatprep.subr.mxu0 0.0
    %289 = vmatpush1.msra.mxu0 0.0
    %290 = vmatprep.subr.mxu0 0.0
    %291 = vmatpush1.msra.mxu0 0.0
    %292 = vmatprep.subr.mxu0 0.0
    %293 = vmatpush1.msra.mxu0 0.0
    %294 = vmatprep.subr.mxu0 0.0
    %295 = vmatpush1.msra.mxu0 0.0
    %296 = vmatprep.subr.mxu0 0.0
    %297 = vmatpush1.msra.mxu0 0.0
    %298 = vmatprep.subr.mxu0 0.0
    %299 = vmatpush1.msra.mxu0 0.0
    %300 = vmatprep.subr.mxu0 0.0
    %301 = vmatpush1.msra.mxu0 0.0
    %302 = vmatprep.subr.mxu0 0.0
    %303 = vmatpush1.msra.mxu0 %v136
    %304 = vmatprep.subr.mxu0 0.0
    %305 = vmatpush1.msra.mxu0 %v135
    %306 = vmatprep.subr.mxu0 0.0
    %307 = vmatpush1.msra.mxu0 %v134
    %308 = vmatprep.subr.mxu0 0.0
    %309 = vmatpush1.msra.mxu0 %v133
    %310 = vmatprep.subr.mxu0 0.0
    %311 = vmatpush2.msra.mxu0 0.0
    %312 = vmatprep.subr.mxu0 0.0
    %313 = vmatpush2.msra.mxu0 0.0
    %314 = vmatprep.subr.mxu0 0.0
    %315 = vmatpush2.msra.mxu0 0.0
    %316 = vmatprep.subr.mxu0 0.0
    %317 = vmatpush2.msra.mxu0 0.0
    %318 = vmatprep.subr.mxu0 0.0
    %319 = vmatpush2.msra.mxu0 0.0
    %320 = vmatprep.subr.mxu0 0.0
    %321 = vmatpush2.msra.mxu0 0.0
    %322 = vmatprep.subr.mxu0 0.0
    %323 = vmatpush2.msra.mxu0 0.0
    %324 = vmatprep.subr.mxu0 0.0
    %325 = vmatpush2.msra.mxu0 0.0
    %326 = vmatprep.subr.mxu0 0.0
    %327 = vmatpush2.msra.mxu0 0.0
    %328 = vmatprep.subr.mxu0 0.0
    %329 = vmatpush2.msra.mxu0 0.0
    %330 = vmatprep.subr.mxu0 0.0
    %331 = vmatpush2.msra.mxu0 0.0
    %332 = vmatprep.subr.mxu0 0.0
    %333 = vmatpush2.msra.mxu0 0.0
    %334 = vmatprep.subr.mxu0 0.0
    %335 = vmatpush2.msra.mxu0 0.0
    %336 = vmatprep.subr.mxu0 0.0
    %337 = vmatpush2.msra.mxu0 0.0
    %338 = vmatprep.subr.mxu0 0.0
    %339 = vmatpush2.msra.mxu0 0.0
    %340 = vmatprep.subr.mxu0 0.0
    %341 = vmatpush2.msra.mxu0 0.0
    %342 = vmatprep.mubr.f32.mxu0 0.0
    %343 = vmatmul.mubr.f32.gmra.mxu0 %v276
    %v344 = vpop.f32.mrf.mxu0
    %v345 = vadd.f32 0.0, %v344
    %v346 = vpop.f32.mrf.mxu0
    %347 = vdwg.mxu0
    %v349 = vrot.slane %v345, 1
    %v352 = vadd.f32 %v267, %v345
    %v353 = vadd.f32 %v268, %v349
    %v354 = vxor.u32 %v352, 2147483648
    %v355 = vxor.u32 %v353, 2147483648
    %v356 = vmul.f32 %v354, 1.442695
    %v357 = vpow.pop %v356
    %v358 = vmul.f32 %v355, 1.442695
    %v359 = vpow.pop %v358
    %v360 = vadd.f32 %v357, 1.0
    %v361 = vadd.f32 %v359, 1.0
    %v362 = vrcp.pop %v360
    %v363 = vmul.f32 1.0, %v362
    %v364 = vrcp.pop %v361
    %v365 = vmul.f32 1.0, %v364
    %v366 = vtanh.pop %v352
    %v367 = vtanh.pop %v353
    %v368 = vmul.f32 %v363, %v253
    %v369 = vmul.f32 %v365, %v254
    %372 = vrot.lane.b32.xlu0 %v366, 32
    %v373 = vpop.permute.xlu0 %372
    %374 = vrot.lane.b32.xlu0 %v367, 32
    %v375 = vpop.permute.xlu0 %374
    %v378 = vmul.f32 %v363, %v373
    %v379 = vmul.f32 %v365, %v375
    %382 = vrot.lane.b32.xlu0 %v378, 32
    %v383 = vpop.permute.xlu0 %382
    %384 = vrot.lane.b32.xlu0 %v379, 32
    %v385 = vpop.permute.xlu0 %384
    %v388 = vadd.f32 %v368, %v383
    %v389 = vadd.f32 %v369, %v385
    %v390 = vtanh.pop %v388
    %v391 = vtanh.pop %v389
    %394 = vrot.lane.b32.xlu0 %v390, 32
    %v395 = vpop.permute.xlu0 %394
    %396 = vrot.lane.b32.xlu0 %v391, 32
    %v397 = vpop.permute.xlu0 %396
    %v400 = vmul.f32 %v363, %v395
    %v401 = vmul.f32 %v365, %v397
    %v402 = vld [vmem:[#allocation2 + $0x2] sm:$0x1]
    %v403 = vld [vmem:[#allocation2 + $0xa] sm:$0x1]
    %v406 = vrot.slane %v401, 7
    %v407 = vsel %vm272, %v406, %v400
    %408 = vrot.lane.b32.xlu0 %v407, 64
    %v409 = vpop.permute.xlu0 %408
    %v410 = vsel %vm139, %v409, 0
    %412 = vmatprep.subr.mxu0 0.0
    %413 = vmatpush1.msra.mxu0 0.0
    %414 = vmatprep.subr.mxu0 0.0
    %415 = vmatpush1.msra.mxu0 0.0
    %416 = vmatprep.subr.mxu0 0.0
    %417 = vmatpush1.msra.mxu0 0.0
    %418 = vmatprep.subr.mxu0 0.0
    %419 = vmatpush1.msra.mxu0 0.0
    %420 = vmatprep.subr.mxu0 0.0
    %421 = vmatpush1.msra.mxu0 0.0
    %422 = vmatprep.subr.mxu0 0.0
    %423 = vmatpush1.msra.mxu0 0.0
    %424 = vmatprep.subr.mxu0 0.0
    %425 = vmatpush1.msra.mxu0 0.0
    %426 = vmatprep.subr.mxu0 0.0
    %427 = vmatpush1.msra.mxu0 0.0
    %428 = vmatprep.subr.mxu0 0.0
    %429 = vmatpush1.msra.mxu0 0.0
    %430 = vmatprep.subr.mxu0 0.0
    %431 = vmatpush1.msra.mxu0 0.0
    %432 = vmatprep.subr.mxu0 0.0
    %433 = vmatpush1.msra.mxu0 0.0
    %434 = vmatprep.subr.mxu0 0.0
    %435 = vmatpush1.msra.mxu0 0.0
    %436 = vmatprep.subr.mxu0 0.0
    %437 = vmatpush1.msra.mxu0 %v136
    %438 = vmatprep.subr.mxu0 0.0
    %439 = vmatpush1.msra.mxu0 %v135
    %440 = vmatprep.subr.mxu0 0.0
    %441 = vmatpush1.msra.mxu0 %v134
    %442 = vmatprep.subr.mxu0 0.0
    %443 = vmatpush1.msra.mxu0 %v133
    %444 = vmatprep.subr.mxu0 0.0
    %445 = vmatpush2.msra.mxu0 0.0
    %446 = vmatprep.subr.mxu0 0.0
    %447 = vmatpush2.msra.mxu0 0.0
    %448 = vmatprep.subr.mxu0 0.0
    %449 = vmatpush2.msra.mxu0 0.0
    %450 = vmatprep.subr.mxu0 0.0
    %451 = vmatpush2.msra.mxu0 0.0
    %452 = vmatprep.subr.mxu0 0.0
    %453 = vmatpush2.msra.mxu0 0.0
    %454 = vmatprep.subr.mxu0 0.0
    %455 = vmatpush2.msra.mxu0 0.0
    %456 = vmatprep.subr.mxu0 0.0
    %457 = vmatpush2.msra.mxu0 0.0
    %458 = vmatprep.subr.mxu0 0.0
    %459 = vmatpush2.msra.mxu0 0.0
    %460 = vmatprep.subr.mxu0 0.0
    %461 = vmatpush2.msra.mxu0 0.0
    %462 = vmatprep.subr.mxu0 0.0
    %463 = vmatpush2.msra.mxu0 0.0
    %464 = vmatprep.subr.mxu0 0.0
    %465 = vmatpush2.msra.mxu0 0.0
    %466 = vmatprep.subr.mxu0 0.0
    %467 = vmatpush2.msra.mxu0 0.0
    %468 = vmatprep.subr.mxu0 0.0
    %469 = vmatpush2.msra.mxu0 0.0
    %470 = vmatprep.subr.mxu0 0.0
    %471 = vmatpush2.msra.mxu0 0.0
    %472 = vmatprep.subr.mxu0 0.0
    %473 = vmatpush2.msra.mxu0 0.0
    %474 = vmatprep.subr.mxu0 0.0
    %475 = vmatpush2.msra.mxu0 0.0
    %476 = vmatprep.mubr.f32.mxu0 0.0
    %477 = vmatmul.mubr.f32.gmra.mxu0 %v410
    %v478 = vpop.f32.mrf.mxu0
    %v479 = vadd.f32 0.0, %v478
    %v480 = vpop.f32.mrf.mxu0
    %481 = vdwg.mxu0
    %v483 = vrot.slane %v479, 1
    %v486 = vadd.f32 %v402, %v479
    %v487 = vadd.f32 %v403, %v483
    %v488 = vxor.u32 %v486, 2147483648
    %v489 = vxor.u32 %v487, 2147483648
    %v490 = vmul.f32 %v488, 1.442695
    %v491 = vpow.pop %v490
    %v492 = vmul.f32 %v489, 1.442695
    %v493 = vpow.pop %v492
    %v494 = vadd.f32 %v491, 1.0
    %v495 = vadd.f32 %v493, 1.0
    %v496 = vrcp.pop %v494
    %v497 = vmul.f32 1.0, %v496
    %v498 = vrcp.pop %v495
    %v499 = vmul.f32 1.0, %v498
    %v500 = vtanh.pop %v486
    %v501 = vtanh.pop %v487
    %v502 = vmul.f32 %v497, %v388
    %v503 = vmul.f32 %v499, %v389
    %506 = vrot.lane.b32.xlu0 %v500, 32
    %v507 = vpop.permute.xlu0 %506
    %508 = vrot.lane.b32.xlu0 %v501, 32
    %v509 = vpop.permute.xlu0 %508
    %v512 = vmul.f32 %v497, %v507
    %v513 = vmul.f32 %v499, %v509
    %516 = vrot.lane.b32.xlu0 %v512, 32
    %v517 = vpop.permute.xlu0 %516
    %518 = vrot.lane.b32.xlu0 %v513, 32
    %v519 = vpop.permute.xlu0 %518
    %v522 = vadd.f32 %v502, %v517
    %v523 = vadd.f32 %v503, %v519
    %v524 = vtanh.pop %v522
    %v525 = vtanh.pop %v523
    %528 = vrot.lane.b32.xlu0 %v524, 32
    %v529 = vpop.permute.xlu0 %528
    %530 = vrot.lane.b32.xlu0 %v525, 32
    %v531 = vpop.permute.xlu0 %530
    %v534 = vmul.f32 %v497, %v529
    %v535 = vmul.f32 %v499, %v531
    %v536 = vld [vmem:[#allocation2 + $0x3] sm:$0x1]
    %v537 = vld [vmem:[#allocation2 + $0xb] sm:$0x1]
    %v540 = vrot.slane %v535, 7
    %v541 = vsel %vm272, %v540, %v534
    %542 = vrot.lane.b32.xlu0 %v541, 64
    %v543 = vpop.permute.xlu0 %542
    %v544 = vsel %vm139, %v543, 0
    %546 = vmatprep.subr.mxu0 0.0
    %547 = vmatpush1.msra.mxu0 0.0
    %548 = vmatprep.subr.mxu0 0.0
    %549 = vmatpush1.msra.mxu0 0.0
    %550 = vmatprep.subr.mxu0 0.0
    %551 = vmatpush1.msra.mxu0 0.0
    %552 = vmatprep.subr.mxu0 0.0
    %553 = vmatpush1.msra.mxu0 0.0
    %554 = vmatprep.subr.mxu0 0.0
    %555 = vmatpush1.msra.mxu0 0.0
    %556 = vmatprep.subr.mxu0 0.0
    %557 = vmatpush1.msra.mxu0 0.0
    %558 = vmatprep.subr.mxu0 0.0
    %559 = vmatpush1.msra.mxu0 0.0
    %560 = vmatprep.subr.mxu0 0.0
    %561 = vmatpush1.msra.mxu0 0.0
    %562 = vmatprep.subr.mxu0 0.0
    %563 = vmatpush1.msra.mxu0 0.0
    %564 = vmatprep.subr.mxu0 0.0
    %565 = vmatpush1.msra.mxu0 0.0
    %566 = vmatprep.subr.mxu0 0.0
    %567 = vmatpush1.msra.mxu0 0.0
    %568 = vmatprep.subr.mxu0 0.0
    %569 = vmatpush1.msra.mxu0 0.0
    %570 = vmatprep.subr.mxu0 0.0
    %571 = vmatpush1.msra.mxu0 %v136
    %572 = vmatprep.subr.mxu0 0.0
    %573 = vmatpush1.msra.mxu0 %v135
    %574 = vmatprep.subr.mxu0 0.0
    %575 = vmatpush1.msra.mxu0 %v134
    %576 = vmatprep.subr.mxu0 0.0
    %577 = vmatpush1.msra.mxu0 %v133
    %578 = vmatprep.subr.mxu0 0.0
    %579 = vmatpush2.msra.mxu0 0.0
    %580 = vmatprep.subr.mxu0 0.0
    %581 = vmatpush2.msra.mxu0 0.0
    %582 = vmatprep.subr.mxu0 0.0
    %583 = vmatpush2.msra.mxu0 0.0
    %584 = vmatprep.subr.mxu0 0.0
    %585 = vmatpush2.msra.mxu0 0.0
    %586 = vmatprep.subr.mxu0 0.0
    %587 = vmatpush2.msra.mxu0 0.0
    %588 = vmatprep.subr.mxu0 0.0
    %589 = vmatpush2.msra.mxu0 0.0
    %590 = vmatprep.subr.mxu0 0.0
    %591 = vmatpush2.msra.mxu0 0.0
    %592 = vmatprep.subr.mxu0 0.0
    %593 = vmatpush2.msra.mxu0 0.0
    %594 = vmatprep.subr.mxu0 0.0
    %595 = vmatpush2.msra.mxu0 0.0
    %596 = vmatprep.subr.mxu0 0.0
    %597 = vmatpush2.msra.mxu0 0.0
    %598 = vmatprep.subr.mxu0 0.0
    %599 = vmatpush2.msra.mxu0 0.0
    %600 = vmatprep.subr.mxu0 0.0
    %601 = vmatpush2.msra.mxu0 0.0
    %602 = vmatprep.subr.mxu0 0.0
    %603 = vmatpush2.msra.mxu0 0.0
    %604 = vmatprep.subr.mxu0 0.0
    %605 = vmatpush2.msra.mxu0 0.0
    %606 = vmatprep.subr.mxu0 0.0
    %607 = vmatpush2.msra.mxu0 0.0
    %608 = vmatprep.subr.mxu0 0.0
    %609 = vmatpush2.msra.mxu0 0.0
    %610 = vmatprep.mubr.f32.mxu0 0.0
    %611 = vmatmul.mubr.f32.gmra.mxu0 %v544
    %v612 = vpop.f32.mrf.mxu0
    %v613 = vadd.f32 0.0, %v612
    %v614 = vpop.f32.mrf.mxu0
    %615 = vdwg.mxu0
    %v617 = vrot.slane %v613, 1
    %v620 = vadd.f32 %v536, %v613
    %v621 = vadd.f32 %v537, %v617
    %v622 = vxor.u32 %v620, 2147483648
    %v623 = vxor.u32 %v621, 2147483648
    %v624 = vmul.f32 %v622, 1.442695
    %v625 = vpow.pop %v624
    %v626 = vmul.f32 %v623, 1.442695
    %v627 = vpow.pop %v626
    %v628 = vadd.f32 %v625, 1.0
    %v629 = vadd.f32 %v627, 1.0
    %v630 = vrcp.pop %v628
    %v631 = vmul.f32 1.0, %v630
    %v632 = vrcp.pop %v629
    %v633 = vmul.f32 1.0, %v632
    %v634 = vtanh.pop %v620
    %v635 = vtanh.pop %v621
    %v636 = vmul.f32 %v631, %v522
    %v637 = vmul.f32 %v633, %v523
    %640 = vrot.lane.b32.xlu0 %v634, 32
    %v641 = vpop.permute.xlu0 %640
    %642 = vrot.lane.b32.xlu0 %v635, 32
    %v643 = vpop.permute.xlu0 %642
    %v646 = vmul.f32 %v631, %v641
    %v647 = vmul.f32 %v633, %v643
    %650 = vrot.lane.b32.xlu0 %v646, 32
    %v651 = vpop.permute.xlu0 %650
    %652 = vrot.lane.b32.xlu0 %v647, 32
    %v653 = vpop.permute.xlu0 %652
    %v656 = vadd.f32 %v636, %v651
    %v657 = vadd.f32 %v637, %v653
    %v658 = vtanh.pop %v656
    %v659 = vtanh.pop %v657
    %662 = vrot.lane.b32.xlu0 %v658, 32
    %v663 = vpop.permute.xlu0 %662
    %664 = vrot.lane.b32.xlu0 %v659, 32
    %v665 = vpop.permute.xlu0 %664
    %v668 = vmul.f32 %v631, %v663
    %v669 = vmul.f32 %v633, %v665
    %v670 = vld [vmem:[#allocation2 + $0x4] sm:$0x1]
    %v671 = vld [vmem:[#allocation2 + $0xc] sm:$0x1]
    %v674 = vrot.slane %v669, 7
    %v675 = vsel %vm272, %v674, %v668
    %676 = vrot.lane.b32.xlu0 %v675, 64
    %v677 = vpop.permute.xlu0 %676
    %v678 = vsel %vm139, %v677, 0
    %680 = vmatprep.subr.mxu0 0.0
    %681 = vmatpush1.msra.mxu0 0.0
    %682 = vmatprep.subr.mxu0 0.0
    %683 = vmatpush1.msra.mxu0 0.0
    %684 = vmatprep.subr.mxu0 0.0
    %685 = vmatpush1.msra.mxu0 0.0
    %686 = vmatprep.subr.mxu0 0.0
    %687 = vmatpush1.msra.mxu0 0.0
    %688 = vmatprep.subr.mxu0 0.0
    %689 = vmatpush1.msra.mxu0 0.0
    %690 = vmatprep.subr.mxu0 0.0
    %691 = vmatpush1.msra.mxu0 0.0
    %692 = vmatprep.subr.mxu0 0.0
    %693 = vmatpush1.msra.mxu0 0.0
    %694 = vmatprep.subr.mxu0 0.0
    %695 = vmatpush1.msra.mxu0 0.0
    %696 = vmatprep.subr.mxu0 0.0
    %697 = vmatpush1.msra.mxu0 0.0
    %698 = vmatprep.subr.mxu0 0.0
    %699 = vmatpush1.msra.mxu0 0.0
    %700 = vmatprep.subr.mxu0 0.0
    %701 = vmatpush1.msra.mxu0 0.0
    %702 = vmatprep.subr.mxu0 0.0
    %703 = vmatpush1.msra.mxu0 0.0
    %704 = vmatprep.subr.mxu0 0.0
    %705 = vmatpush1.msra.mxu0 %v136
    %706 = vmatprep.subr.mxu0 0.0
    %707 = vmatpush1.msra.mxu0 %v135
    %708 = vmatprep.subr.mxu0 0.0
    %709 = vmatpush1.msra.mxu0 %v134
    %710 = vmatprep.subr.mxu0 0.0
    %711 = vmatpush1.msra.mxu0 %v133
    %712 = vmatprep.subr.mxu0 0.0
    %713 = vmatpush2.msra.mxu0 0.0
    %714 = vmatprep.subr.mxu0 0.0
    %715 = vmatpush2.msra.mxu0 0.0
    %716 = vmatprep.subr.mxu0 0.0
    %717 = vmatpush2.msra.mxu0 0.0
    %718 = vmatprep.subr.mxu0 0.0
    %719 = vmatpush2.msra.mxu0 0.0
    %720 = vmatprep.subr.mxu0 0.0
    %721 = vmatpush2.msra.mxu0 0.0
    %722 = vmatprep.subr.mxu0 0.0
    %723 = vmatpush2.msra.mxu0 0.0
    %724 = vmatprep.subr.mxu0 0.0
    %725 = vmatpush2.msra.mxu0 0.0
    %726 = vmatprep.subr.mxu0 0.0
    %727 = vmatpush2.msra.mxu0 0.0
    %728 = vmatprep.subr.mxu0 0.0
    %729 = vmatpush2.msra.mxu0 0.0
    %730 = vmatprep.subr.mxu0 0.0
    %731 = vmatpush2.msra.mxu0 0.0
    %732 = vmatprep.subr.mxu0 0.0
    %733 = vmatpush2.msra.mxu0 0.0
    %734 = vmatprep.subr.mxu0 0.0
    %735 = vmatpush2.msra.mxu0 0.0
    %736 = vmatprep.subr.mxu0 0.0
    %737 = vmatpush2.msra.mxu0 0.0
    %738 = vmatprep.subr.mxu0 0.0
    %739 = vmatpush2.msra.mxu0 0.0
    %740 = vmatprep.subr.mxu0 0.0
    %741 = vmatpush2.msra.mxu0 0.0
    %742 = vmatprep.subr.mxu0 0.0
    %743 = vmatpush2.msra.mxu0 0.0
    %744 = vmatprep.mubr.f32.mxu0 0.0
    %745 = vmatmul.mubr.f32.gmra.mxu0 %v678
    %v746 = vpop.f32.mrf.mxu0
    %v747 = vadd.f32 0.0, %v746
    %v748 = vpop.f32.mrf.mxu0
    %749 = vdwg.mxu0
    %v751 = vrot.slane %v747, 1
    %v754 = vadd.f32 %v670, %v747
    %v755 = vadd.f32 %v671, %v751
    %v756 = vxor.u32 %v754, 2147483648
    %v757 = vxor.u32 %v755, 2147483648
    %v758 = vmul.f32 %v756, 1.442695
    %v759 = vpow.pop %v758
    %v760 = vmul.f32 %v757, 1.442695
    %v761 = vpow.pop %v760
    %v762 = vadd.f32 %v759, 1.0
    %v763 = vadd.f32 %v761, 1.0
    %v764 = vrcp.pop %v762
    %v765 = vmul.f32 1.0, %v764
    %v766 = vrcp.pop %v763
    %v767 = vmul.f32 1.0, %v766
    %v768 = vtanh.pop %v754
    %v769 = vtanh.pop %v755
    %v770 = vmul.f32 %v765, %v656
    %v771 = vmul.f32 %v767, %v657
    %774 = vrot.lane.b32.xlu0 %v768, 32
    %v775 = vpop.permute.xlu0 %774
    %776 = vrot.lane.b32.xlu0 %v769, 32
    %v777 = vpop.permute.xlu0 %776
    %v780 = vmul.f32 %v765, %v775
    %v781 = vmul.f32 %v767, %v777
    %784 = vrot.lane.b32.xlu0 %v780, 32
    %v785 = vpop.permute.xlu0 %784
    %786 = vrot.lane.b32.xlu0 %v781, 32
    %v787 = vpop.permute.xlu0 %786
    %v790 = vadd.f32 %v770, %v785
    %v791 = vadd.f32 %v771, %v787
    %v792 = vtanh.pop %v790
    %v793 = vtanh.pop %v791
    %796 = vrot.lane.b32.xlu0 %v792, 32
    %v797 = vpop.permute.xlu0 %796
    %798 = vrot.lane.b32.xlu0 %v793, 32
    %v799 = vpop.permute.xlu0 %798
    %v802 = vmul.f32 %v765, %v797
    %v803 = vmul.f32 %v767, %v799
    %v804 = vld [vmem:[#allocation2 + $0x5] sm:$0x1]
    %v805 = vld [vmem:[#allocation2 + $0xd] sm:$0x1]
    %v808 = vrot.slane %v803, 7
    %v809 = vsel %vm272, %v808, %v802
    %810 = vrot.lane.b32.xlu0 %v809, 64
    %v811 = vpop.permute.xlu0 %810
    %v812 = vsel %vm139, %v811, 0
    %814 = vmatprep.subr.mxu0 0.0
    %815 = vmatpush1.msra.mxu0 0.0
    %816 = vmatprep.subr.mxu0 0.0
    %817 = vmatpush1.msra.mxu0 0.0
    %818 = vmatprep.subr.mxu0 0.0
    %819 = vmatpush1.msra.mxu0 0.0
    %820 = vmatprep.subr.mxu0 0.0
    %821 = vmatpush1.msra.mxu0 0.0
    %822 = vmatprep.subr.mxu0 0.0
    %823 = vmatpush1.msra.mxu0 0.0
    %824 = vmatprep.subr.mxu0 0.0
    %825 = vmatpush1.msra.mxu0 0.0
    %826 = vmatprep.subr.mxu0 0.0
    %827 = vmatpush1.msra.mxu0 0.0
    %828 = vmatprep.subr.mxu0 0.0
    %829 = vmatpush1.msra.mxu0 0.0
    %830 = vmatprep.subr.mxu0 0.0
    %831 = vmatpush1.msra.mxu0 0.0
    %832 = vmatprep.subr.mxu0 0.0
    %833 = vmatpush1.msra.mxu0 0.0
    %834 = vmatprep.subr.mxu0 0.0
    %835 = vmatpush1.msra.mxu0 0.0
    %836 = vmatprep.subr.mxu0 0.0
    %837 = vmatpush1.msra.mxu0 0.0
    %838 = vmatprep.subr.mxu0 0.0
    %839 = vmatpush1.msra.mxu0 %v136
    %840 = vmatprep.subr.mxu0 0.0
    %841 = vmatpush1.msra.mxu0 %v135
    %842 = vmatprep.subr.mxu0 0.0
    %843 = vmatpush1.msra.mxu0 %v134
    %844 = vmatprep.subr.mxu0 0.0
    %845 = vmatpush1.msra.mxu0 %v133
    %846 = vmatprep.subr.mxu0 0.0
    %847 = vmatpush2.msra.mxu0 0.0
    %848 = vmatprep.subr.mxu0 0.0
    %849 = vmatpush2.msra.mxu0 0.0
    %850 = vmatprep.subr.mxu0 0.0
    %851 = vmatpush2.msra.mxu0 0.0
    %852 = vmatprep.subr.mxu0 0.0
    %853 = vmatpush2.msra.mxu0 0.0
    %854 = vmatprep.subr.mxu0 0.0
    %855 = vmatpush2.msra.mxu0 0.0
    %856 = vmatprep.subr.mxu0 0.0
    %857 = vmatpush2.msra.mxu0 0.0
    %858 = vmatprep.subr.mxu0 0.0
    %859 = vmatpush2.msra.mxu0 0.0
    %860 = vmatprep.subr.mxu0 0.0
    %861 = vmatpush2.msra.mxu0 0.0
    %862 = vmatprep.subr.mxu0 0.0
    %863 = vmatpush2.msra.mxu0 0.0
    %864 = vmatprep.subr.mxu0 0.0
    %865 = vmatpush2.msra.mxu0 0.0
    %866 = vmatprep.subr.mxu0 0.0
    %867 = vmatpush2.msra.mxu0 0.0
    %868 = vmatprep.subr.mxu0 0.0
    %869 = vmatpush2.msra.mxu0 0.0
    %870 = vmatprep.subr.mxu0 0.0
    %871 = vmatpush2.msra.mxu0 0.0
    %872 = vmatprep.subr.mxu0 0.0
    %873 = vmatpush2.msra.mxu0 0.0
    %874 = vmatprep.subr.mxu0 0.0
    %875 = vmatpush2.msra.mxu0 0.0
    %876 = vmatprep.subr.mxu0 0.0
    %877 = vmatpush2.msra.mxu0 0.0
    %878 = vmatprep.mubr.f32.mxu0 0.0
    %879 = vmatmul.mubr.f32.gmra.mxu0 %v812
    %v880 = vpop.f32.mrf.mxu0
    %v881 = vadd.f32 0.0, %v880
    %v882 = vpop.f32.mrf.mxu0
    %883 = vdwg.mxu0
    %v885 = vrot.slane %v881, 1
    %v888 = vadd.f32 %v804, %v881
    %v889 = vadd.f32 %v805, %v885
    %v890 = vxor.u32 %v888, 2147483648
    %v891 = vxor.u32 %v889, 2147483648
    %v892 = vmul.f32 %v890, 1.442695
    %v893 = vpow.pop %v892
    %v894 = vmul.f32 %v891, 1.442695
    %v895 = vpow.pop %v894
    %v896 = vadd.f32 %v893, 1.0
    %v897 = vadd.f32 %v895, 1.0
    %v898 = vrcp.pop %v896
    %v899 = vmul.f32 1.0, %v898
    %v900 = vrcp.pop %v897
    %v901 = vmul.f32 1.0, %v900
    %v902 = vtanh.pop %v888
    %v903 = vtanh.pop %v889
    %v904 = vmul.f32 %v899, %v790
    %v905 = vmul.f32 %v901, %v791
    %908 = vrot.lane.b32.xlu0 %v902, 32
    %v909 = vpop.permute.xlu0 %908
    %910 = vrot.lane.b32.xlu0 %v903, 32
    %v911 = vpop.permute.xlu0 %910
    %v914 = vmul.f32 %v899, %v909
    %v915 = vmul.f32 %v901, %v911
    %918 = vrot.lane.b32.xlu0 %v914, 32
    %v919 = vpop.permute.xlu0 %918
    %920 = vrot.lane.b32.xlu0 %v915, 32
    %v921 = vpop.permute.xlu0 %920
    %v924 = vadd.f32 %v904, %v919
    %v925 = vadd.f32 %v905, %v921
    %v926 = vtanh.pop %v924
    %v927 = vtanh.pop %v925
    %930 = vrot.lane.b32.xlu0 %v926, 32
    %v931 = vpop.permute.xlu0 %930
    %932 = vrot.lane.b32.xlu0 %v927, 32
    %v933 = vpop.permute.xlu0 %932
    %v936 = vmul.f32 %v899, %v931
    %v937 = vmul.f32 %v901, %v933
    %v938 = vld [vmem:[#allocation2 + $0x6] sm:$0x1]
    %v939 = vld [vmem:[#allocation2 + $0xe] sm:$0x1]
    %v942 = vrot.slane %v937, 7
    %v943 = vsel %vm272, %v942, %v936
    %944 = vrot.lane.b32.xlu0 %v943, 64
    %v945 = vpop.permute.xlu0 %944
    %v946 = vsel %vm139, %v945, 0
    %948 = vmatprep.subr.mxu0 0.0
    %949 = vmatpush1.msra.mxu0 0.0
    %950 = vmatprep.subr.mxu0 0.0
    %951 = vmatpush1.msra.mxu0 0.0
    %952 = vmatprep.subr.mxu0 0.0
    %953 = vmatpush1.msra.mxu0 0.0
    %954 = vmatprep.subr.mxu0 0.0
    %955 = vmatpush1.msra.mxu0 0.0
    %956 = vmatprep.subr.mxu0 0.0
    %957 = vmatpush1.msra.mxu0 0.0
    %958 = vmatprep.subr.mxu0 0.0
    %959 = vmatpush1.msra.mxu0 0.0
    %960 = vmatprep.subr.mxu0 0.0
    %961 = vmatpush1.msra.mxu0 0.0
    %962 = vmatprep.subr.mxu0 0.0
    %963 = vmatpush1.msra.mxu0 0.0
    %964 = vmatprep.subr.mxu0 0.0
    %965 = vmatpush1.msra.mxu0 0.0
    %966 = vmatprep.subr.mxu0 0.0
    %967 = vmatpush1.msra.mxu0 0.0
    %968 = vmatprep.subr.mxu0 0.0
    %969 = vmatpush1.msra.mxu0 0.0
    %970 = vmatprep.subr.mxu0 0.0
    %971 = vmatpush1.msra.mxu0 0.0
    %972 = vmatprep.subr.mxu0 0.0
    %973 = vmatpush1.msra.mxu0 %v136
    %974 = vmatprep.subr.mxu0 0.0
    %975 = vmatpush1.msra.mxu0 %v135
    %976 = vmatprep.subr.mxu0 0.0
    %977 = vmatpush1.msra.mxu0 %v134
    %978 = vmatprep.subr.mxu0 0.0
    %979 = vmatpush1.msra.mxu0 %v133
    %980 = vmatprep.subr.mxu0 0.0
    %981 = vmatpush2.msra.mxu0 0.0
    %982 = vmatprep.subr.mxu0 0.0
    %983 = vmatpush2.msra.mxu0 0.0
    %984 = vmatprep.subr.mxu0 0.0
    %985 = vmatpush2.msra.mxu0 0.0
    %986 = vmatprep.subr.mxu0 0.0
    %987 = vmatpush2.msra.mxu0 0.0
    %988 = vmatprep.subr.mxu0 0.0
    %989 = vmatpush2.msra.mxu0 0.0
    %990 = vmatprep.subr.mxu0 0.0
    %991 = vmatpush2.msra.mxu0 0.0
    %992 = vmatprep.subr.mxu0 0.0
    %993 = vmatpush2.msra.mxu0 0.0
    %994 = vmatprep.subr.mxu0 0.0
    %995 = vmatpush2.msra.mxu0 0.0
    %996 = vmatprep.subr.mxu0 0.0
    %997 = vmatpush2.msra.mxu0 0.0
    %998 = vmatprep.subr.mxu0 0.0
    %999 = vmatpush2.msra.mxu0 0.0
    %1000 = vmatprep.subr.mxu0 0.0
    %1001 = vmatpush2.msra.mxu0 0.0
    %1002 = vmatprep.subr.mxu0 0.0
    %1003 = vmatpush2.msra.mxu0 0.0
    %1004 = vmatprep.subr.mxu0 0.0
    %1005 = vmatpush2.msra.mxu0 0.0
    %1006 = vmatprep.subr.mxu0 0.0
    %1007 = vmatpush2.msra.mxu0 0.0
    %1008 = vmatprep.subr.mxu0 0.0
    %1009 = vmatpush2.msra.mxu0 0.0
    %1010 = vmatprep.subr.mxu0 0.0
    %1011 = vmatpush2.msra.mxu0 0.0
    %1012 = vmatprep.mubr.f32.mxu0 0.0
    %1013 = vmatmul.mubr.f32.gmra.mxu0 %v946
    %v1014 = vpop.f32.mrf.mxu0
    %v1015 = vadd.f32 0.0, %v1014
    %v1016 = vpop.f32.mrf.mxu0
    %1017 = vdwg.mxu0
    %v1019 = vrot.slane %v1015, 1
    %v1022 = vadd.f32 %v938, %v1015
    %v1023 = vadd.f32 %v939, %v1019
    %v1024 = vxor.u32 %v1022, 2147483648
    %v1025 = vxor.u32 %v1023, 2147483648
    %v1026 = vmul.f32 %v1024, 1.442695
    %v1027 = vpow.pop %v1026
    %v1028 = vmul.f32 %v1025, 1.442695
    %v1029 = vpow.pop %v1028
    %v1030 = vadd.f32 %v1027, 1.0
    %v1031 = vadd.f32 %v1029, 1.0
    %v1032 = vrcp.pop %v1030
    %v1033 = vmul.f32 1.0, %v1032
    %v1034 = vrcp.pop %v1031
    %v1035 = vmul.f32 1.0, %v1034
    %v1036 = vtanh.pop %v1022
    %v1037 = vtanh.pop %v1023
    %v1038 = vmul.f32 %v1033, %v924
    %v1039 = vmul.f32 %v1035, %v925
    %1042 = vrot.lane.b32.xlu0 %v1036, 32
    %v1043 = vpop.permute.xlu0 %1042
    %1044 = vrot.lane.b32.xlu0 %v1037, 32
    %v1045 = vpop.permute.xlu0 %1044
    %v1048 = vmul.f32 %v1033, %v1043
    %v1049 = vmul.f32 %v1035, %v1045
    %1052 = vrot.lane.b32.xlu0 %v1048, 32
    %v1053 = vpop.permute.xlu0 %1052
    %1054 = vrot.lane.b32.xlu0 %v1049, 32
    %v1055 = vpop.permute.xlu0 %1054
    %v1058 = vadd.f32 %v1038, %v1053
    %v1059 = vadd.f32 %v1039, %v1055
    %v1060 = vtanh.pop %v1058
    %v1061 = vtanh.pop %v1059
    %1064 = vrot.lane.b32.xlu0 %v1060, 32
    %v1065 = vpop.permute.xlu0 %1064
    %1066 = vrot.lane.b32.xlu0 %v1061, 32
    %v1067 = vpop.permute.xlu0 %1066
    %v1070 = vmul.f32 %v1033, %v1065
    %v1071 = vmul.f32 %v1035, %v1067
    %v1072 = vld [vmem:[#allocation2 + $0x7] sm:$0x1]
    %v1073 = vld [vmem:[#allocation2 + $0xf] sm:$0x1]
    %v1076 = vrot.slane %v1071, 7
    %v1077 = vsel %vm272, %v1076, %v1070
    %1078 = vrot.lane.b32.xlu0 %v1077, 64
    %v1079 = vpop.permute.xlu0 %1078
    %v1080 = vsel %vm139, %v1079, 0
    %1082 = vmatprep.subr.mxu0 0.0
    %1083 = vmatpush1.msra.mxu0 0.0
    %1084 = vmatprep.subr.mxu0 0.0
    %1085 = vmatpush1.msra.mxu0 0.0
    %1086 = vmatprep.subr.mxu0 0.0
    %1087 = vmatpush1.msra.mxu0 0.0
    %1088 = vmatprep.subr.mxu0 0.0
    %1089 = vmatpush1.msra.mxu0 0.0
    %1090 = vmatprep.subr.mxu0 0.0
    %1091 = vmatpush1.msra.mxu0 0.0
    %1092 = vmatprep.subr.mxu0 0.0
    %1093 = vmatpush1.msra.mxu0 0.0
    %1094 = vmatprep.subr.mxu0 0.0
    %1095 = vmatpush1.msra.mxu0 0.0
    %1096 = vmatprep.subr.mxu0 0.0
    %1097 = vmatpush1.msra.mxu0 0.0
    %1098 = vmatprep.subr.mxu0 0.0
    %1099 = vmatpush1.msra.mxu0 0.0
    %1100 = vmatprep.subr.mxu0 0.0
    %1101 = vmatpush1.msra.mxu0 0.0
    %1102 = vmatprep.subr.mxu0 0.0
    %1103 = vmatpush1.msra.mxu0 0.0
    %1104 = vmatprep.subr.mxu0 0.0
    %1105 = vmatpush1.msra.mxu0 0.0
    %1106 = vmatprep.subr.mxu0 0.0
    %1107 = vmatpush1.msra.mxu0 %v136
    %1108 = vmatprep.subr.mxu0 0.0
    %1109 = vmatpush1.msra.mxu0 %v135
    %1110 = vmatprep.subr.mxu0 0.0
    %1111 = vmatpush1.msra.mxu0 %v134
    %1112 = vmatprep.subr.mxu0 0.0
    %1113 = vmatpush1.msra.mxu0 %v133
    %1114 = vmatprep.subr.mxu0 0.0
    %1115 = vmatpush2.msra.mxu0 0.0
    %1116 = vmatprep.subr.mxu0 0.0
    %1117 = vmatpush2.msra.mxu0 0.0
    %1118 = vmatprep.subr.mxu0 0.0
    %1119 = vmatpush2.msra.mxu0 0.0
    %1120 = vmatprep.subr.mxu0 0.0
    %1121 = vmatpush2.msra.mxu0 0.0
    %1122 = vmatprep.subr.mxu0 0.0
    %1123 = vmatpush2.msra.mxu0 0.0
    %1124 = vmatprep.subr.mxu0 0.0
    %1125 = vmatpush2.msra.mxu0 0.0
    %1126 = vmatprep.subr.mxu0 0.0
    %1127 = vmatpush2.msra.mxu0 0.0
    %1128 = vmatprep.subr.mxu0 0.0
    %1129 = vmatpush2.msra.mxu0 0.0
    %1130 = vmatprep.subr.mxu0 0.0
    %1131 = vmatpush2.msra.mxu0 0.0
    %1132 = vmatprep.subr.mxu0 0.0
    %1133 = vmatpush2.msra.mxu0 0.0
    %1134 = vmatprep.subr.mxu0 0.0
    %1135 = vmatpush2.msra.mxu0 0.0
    %1136 = vmatprep.subr.mxu0 0.0
    %1137 = vmatpush2.msra.mxu0 0.0
    %1138 = vmatprep.subr.mxu0 0.0
    %1139 = vmatpush2.msra.mxu0 0.0
    %1140 = vmatprep.subr.mxu0 0.0
    %1141 = vmatpush2.msra.mxu0 0.0
    %1142 = vmatprep.subr.mxu0 0.0
    %1143 = vmatpush2.msra.mxu0 0.0
    %1144 = vmatprep.subr.mxu0 0.0
    %1145 = vmatpush2.msra.mxu0 0.0
    %1146 = vmatprep.mubr.f32.mxu0 0.0
    %1147 = vmatmul.mubr.f32.gmra.mxu0 %v1080
    %v1148 = vpop.f32.mrf.mxu0
    %v1149 = vadd.f32 0.0, %v1148
    %v1150 = vpop.f32.mrf.mxu0
    %1151 = vdwg.mxu0
    %v1153 = vrot.slane %v1149, 1
    %v1156 = vadd.f32 %v1072, %v1149
    %v1157 = vadd.f32 %v1073, %v1153
    %v1158 = vxor.u32 %v1156, 2147483648
    %v1159 = vxor.u32 %v1157, 2147483648
    %v1160 = vmul.f32 %v1158, 1.442695
    %v1161 = vpow.pop %v1160
    %v1162 = vmul.f32 %v1159, 1.442695
    %v1163 = vpow.pop %v1162
    %v1164 = vadd.f32 %v1161, 1.0
    %v1165 = vadd.f32 %v1163, 1.0
    %v1166 = vrcp.pop %v1164
    %v1167 = vmul.f32 1.0, %v1166
    %v1168 = vrcp.pop %v1165
    %v1169 = vmul.f32 1.0, %v1168
    %v1170 = vtanh.pop %v1156
    %v1171 = vtanh.pop %v1157
    %v1172 = vmul.f32 %v1167, %v1058
    %v1173 = vmul.f32 %v1169, %v1059
    %1176 = vrot.lane.b32.xlu0 %v1170, 32
    %v1177 = vpop.permute.xlu0 %1176
    %1178 = vrot.lane.b32.xlu0 %v1171, 32
    %v1179 = vpop.permute.xlu0 %1178
    %v1182 = vmul.f32 %v1167, %v1177
    %v1183 = vmul.f32 %v1169, %v1179
    %1186 = vrot.lane.b32.xlu0 %v1182, 32
    %v1187 = vpop.permute.xlu0 %1186
    %1188 = vrot.lane.b32.xlu0 %v1183, 32
    %v1189 = vpop.permute.xlu0 %1188
    %v1192 = vadd.f32 %v1172, %v1187
    %v1193 = vadd.f32 %v1173, %v1189
    %v1194 = vtanh.pop %v1192
    %v1195 = vtanh.pop %v1193
    %1198 = vrot.lane.b32.xlu0 %v1194, 32
    %v1199 = vpop.permute.xlu0 %1198
    %1200 = vrot.lane.b32.xlu0 %v1195, 32
    %v1201 = vpop.permute.xlu0 %1200
    %v1204 = vmul.f32 %v1167, %v1199
    %v1205 = vmul.f32 %v1169, %v1201
    %1207 = vrot.lane.b32.xlu0 %v407, 96
    %v1208 = vpop.permute.xlu0 %1207
    %1211 = vrot.lane.b32.xlu0 %v675, 32
    %v1212 = vpop.permute.xlu0 %1211
    %1215 = vrot.lane.b32.xlu0 %v943, 96
    %v1216 = vpop.permute.xlu0 %1215
    %v1221 = vrot.slane %v1205, 7
    %v1222 = vsel %vm272, %v1221, %v1204
    %1223 = vrot.lane.b32.xlu0 %v1222, 32
    %v1224 = vpop.permute.xlu0 %1223
    %v1226 = vsel %vm139, %v275, %v1208
    %vm1227 = vcmask 523264
    %v1228 = vsel %vm1227, %v1226, %v541
    %vm1229 = vcmask 785408
    %v1230 = vsel %vm1229, %v1228, %v1212
    %v1231 = vsel %vm139, %v811, %v1216
    %v1232 = vsel %vm1227, %v1231, %v1077
    %v1233 = vsel %vm1229, %v1232, %v1224
    %v1236 = vcombine.low %v1230, %v1233
    %v1238 = vunpack.c.l.s4 1983009808
    %v1239 = vunpack.c.0.s8 %v1238
    %v1240 = vlaneseq
    %v1241 = vshrl.u32 %v1240, 7
    %v1242 = vsub.s32 %v1239, %v1241
    %v1243 = vrot.slane %v1236, %v1242
    %1245 = vst [vmem:[#allocation6] sm:$0xf] %v1243
    %v1248 = vrot.slane %v1193, 7
    %v1249 = vsel %vm272, %v1248, %v1192
    %1250 = vrot.lane.b32.xlu0 %v1249, 96
    %v1251 = vpop.permute.xlu0 %1250
    %vm1253 = vcmask 254976
    %1254 = vst.msk [vmem:[#allocation7] sm:$0x3] %vm1253, %v1251
    // Predicated region
    $region22: #{tpu_custom_call.1} parent=1 // pred_check
      _
    $region23: #{tpu_custom_call.1} parent=1 // pred_check_branch
      %1256 = sbr.rel (0) target = $region25
    $region24: #{tpu_custom_call.1} parent=1 // pred_region
      %s1258 = ssub.s32 64, 64
      %1259 = vsyncadd [#allocation5], %s1258
      %s1261 = sshll.u32 [#allocation6], 4
      %s1262 = int_to_ptr.vmem [resolvable:$true] %s1261
      %1264 = dma.vmem_to_hbm [thread:$0]  %s1262, 64, %s4, [#allocation5]
    $region25: #{tpu_custom_call.1} parent=1 // pred_fallthru
      _
    // Predicated region
    $region26: #{tpu_custom_call.1} parent=1 // pred_check
      _
    $region27: #{tpu_custom_call.1} parent=1 // pred_check_branch
      %1266 = sbr.rel (0) target = $region29
    $region28: #{tpu_custom_call.1} parent=1 // pred_region
      %s1268 = ssub.s32 32, 32
      %1269 = vsyncadd [#allocation8], %s1268
      %s1271 = sshll.u32 [#allocation7], 4
      %s1272 = int_to_ptr.vmem [resolvable:$true] %s1271
      %1274 = dma.vmem_to_hbm [thread:$0]  %s1272, 32, %s5, [#allocation8]
    $region29: #{tpu_custom_call.1} parent=1 // pred_fallthru
      _
    // Predicated region
    $region30: #{tpu_custom_call.1} parent=1 // pred_check
      _
    $region31: #{tpu_custom_call.1} parent=1 // pred_check_branch
      %1276 = sbr.rel (0) target = $region33
    $region32: #{tpu_custom_call.1} parent=1 // pred_region
      %1277 = dma.done [#allocation5], 64
    $region33: #{tpu_custom_call.1} parent=1 // pred_fallthru
      _
    // Predicated region
    $region34: #{tpu_custom_call.1} parent=1 // pred_check
      _
    $region35: #{tpu_custom_call.1} parent=1 // pred_check_branch
      %1279 = sbr.rel (0) target = $region37
    $region36: #{tpu_custom_call.1} parent=1 // pred_region
      %1280 = dma.done [#allocation8], 32
    $region37: #{tpu_custom_call.1} parent=1 // pred_fallthru
      _
    %1281 = vsyncpa [#allocation4], 1
    %1282 = vsyncpa [#allocation5], 1
    %1283 = vsyncpa [#allocation8], 1

</llo_original>
